<compile_context>
chip_gen: v7x
topology: tpu7x:2x2x1
jax: 0.10.0
libtpu: 0.0.40
codegen_flags: <defaults>
</compile_context>

<pallas_src>
import functools
import math

import jax
import jax.numpy as jnp
from jax.experimental import pallas as pl
from jax.experimental.pallas import tpu as pltpu


_LANE = 128


def _renderer_kernel(normal_ref, diff_ref, spec_ref, rough_ref, out_ref, *,
                     tile_rows, width, distance, inv_gamma,
                     x0, dx, y0, dy, y_scale):
    f32 = jnp.float32
    # Inputs arrive in their native dtype; cast per-tile (keeps HBM traffic minimal).
    nx = normal_ref[0, 0].astype(f32)
    ny = normal_ref[0, 1].astype(f32)
    nz = normal_ref[0, 2].astype(f32)
    rough = rough_ref[0, 0].astype(f32)

    # ---- image-plane position from the flat pixel index (lane-dense layout) ----
    shape = (tile_rows, _LANE)
    r = jax.lax.broadcasted_iota(jnp.int32, shape, 0)
    l = jax.lax.broadcasted_iota(jnp.int32, shape, 1)
    base = pl.program_id(1) * (tile_rows * _LANE)
    idx = (base + r * _LANE + l).astype(f32)      # exact for images up to 2**24 px

    # row = idx // W, col = idx % W — division-free: float floor + one-step fixup.
    w_f = float(width)
    row = jnp.floor(idx * (1.0 / w_f))
    row = jnp.where((row + 1.0) * w_f <= idx, row + 1.0, row)
    row = jnp.where(row * w_f > idx, row - 1.0, row)
    col = idx - row * w_f

    # kornia create_meshgrid semantics: x, y in [-1, 1]; y / aspect (=W/H), negated.
    px = x0 + dx * col
    py = -(y0 + dy * row) * y_scale               # y_scale = H / W

    # light_pos == view_pos == (0, 0, distance); image_pos = (px, py, 0).
    dist2 = px * px + py * py + distance * distance
    inv_norm = jax.lax.rsqrt(dist2)               # 1 / |light_pos - image_pos|

    # Degenerate path (rot_angle=None, light_shift=None):
    #   view_dir == light_dir == half  =>  cos_half == cos_light == cos_view,
    #   cos_diff == 1 (fresnel == specular), G1o == G1i.
    # TODO(synk): rot_angle / light_shift need the general half-vector/fresnel path.
    ndotl = (-px) * nx + (-py) * ny + distance * nz
    c = jnp.clip(ndotl * inv_norm, 0.0, 1.0)
    c2 = c * c

    a2 = rough * rough
    a4 = a2 * a2

    # Smith shadowing, G1o == G1i:  geometry = (2 / (1 + sqrt(1 + t)))**2 = 4*inv*inv.
    t = a4 * (1.0 - c2) * pl.reciprocal(c2 + 1e-6, approx=True)
    inv_g = pl.reciprocal(1.0 + jnp.sqrt(1.0 + t), approx=True)
    geometry = 4.0 * inv_g * inv_g

    # GGX distribution and the 1/(4c + eps) term folded into a single reciprocal:
    #   refl = pi * D * G / (4c + eps)  with D = a4 / (pi*d_denom^2 + eps).
    d_denom = c2 * (a4 - 1.0) + 1.0
    prod_denom = (math.pi * d_denom * d_denom + 1e-6) * (4.0 * c + 1e-6)
    refl_scalar = (math.pi * a4) * geometry * pl.reciprocal(prod_denom, approx=True)

    # Light decay, radial**10 (integer-mul chain) and 2.4**2 folded into one scale.
    decay = pl.reciprocal(dist2 + 1e-4, approx=True)
    radial = jnp.clip(distance * inv_norm, 0.0, 1.0)
    r2 = radial * radial
    r4 = r2 * r2
    r10 = r4 * r4 * r2
    scale = decay * r10 * (2.4 * 2.4)

    diff_w = c * scale             # weight for the diffuse albedo (pi * 1/pi folded)
    spec_w = refl_scalar * scale   # weight for the specular albedo (fresnel == spec)

    out_dt = out_ref.dtype
    for ch in range(3):
        val = (diff_ref[0, ch].astype(f32) * diff_w
               + spec_ref[0, ch].astype(f32) * spec_w)
        out_ref[0, ch] = jnp.clip(val ** inv_gamma, 0.0, 1.0).astype(out_dt)


def _vmem_capacity_bytes():
    try:
        return int(pltpu.get_tpu_info().vmem_capacity_bytes)
    except Exception:
        return 128 << 20


def _choose_tile_rows(pr, bs, bytes_per_px):
    """Rows-of-128-pixels per tile: as large as a per-chip VMEM budget allows."""
    cap = _vmem_capacity_bytes()
    # Double-buffered working-set budget; tighter on v7x (64 MiB physical VMEM).
    budget = (22 << 20) if cap >= (96 << 20) else (16 << 20)
    max_rows = max(int(budget // (2 * bytes_per_px * _LANE)), 1)
    tr = min(pr, max_rows)
    if tr < pr:
        tr = max((tr // 8) * 8, 8)          # multiple of 8 (cdiv grid handles ragged end)
    # v7x megacore: guarantee >= 2 grid steps so both TensorCores get work.
    if bs == 1 and tr >= pr and pr >= 16:
        tr = max(8, ((pr // 2 + 7) // 8) * 8)
    return tr, cap


def renderer_forward(brdf_maps, fov=60.0, gamma=2.2, attenuation=2.0,
                     out_dtype=jnp.float32):
    """Pallas implementation of Renderer(fov, gamma, attenuation).forward(brdf_maps).

    Matches forward(brdf_maps, rot_angle=None, light_shift=None). Pass
    out_dtype=jnp.bfloat16 on v6e/v7x to halve store traffic (precision tradeoff).
    """
    # TODO(synk): rot_angle / light_shift branches (axis rotations, light translation)
    # are not implemented.
    del attenuation  # constructor arg; forward() hard-codes radial**10.

    normal = brdf_maps["normal"]
    diffuse = brdf_maps["diffuse"]
    specular = brdf_maps["specular"]
    rough = brdf_maps["roughness"]

    bs, _, H, W = normal.shape
    distance = 1.0 / math.tan((fov / 2.0) / 180.0 * math.pi)
    dx = 2.0 / (W - 1) if W > 1 else 0.0
    dy = 2.0 / (H - 1) if H > 1 else 0.0

    # Flatten the spatial dims to a lane-dense pixel axis: (bs, C, H*W/128, 128).
    P = H * W
    pr = pl.cdiv(P, _LANE)
    p_pad = pr * _LANE

    def to_flat(x, c):
        x = x.reshape(bs, c, P)
        if p_pad != P:
            x = jnp.pad(x, ((0, 0), (0, 0), (0, p_pad - P)))
        return x.reshape(bs, c, pr, _LANE)

    normal_f = to_flat(normal, 3)
    diffuse_f = to_flat(diffuse, 3)
    specular_f = to_flat(specular, 3)
    rough_f = to_flat(rough, 1)

    out_itemsize = jnp.dtype(out_dtype).itemsize
    bytes_per_px = (3 * normal_f.dtype.itemsize + 3 * diffuse_f.dtype.itemsize
                    + 3 * specular_f.dtype.itemsize + rough_f.dtype.itemsize
                    + 3 * out_itemsize)
    tr, vmem_cap = _choose_tile_rows(pr, bs, bytes_per_px)
    n_tiles = pl.cdiv(pr, tr)
    vmem_limit = int(min(64 << 20, max(32 << 20, vmem_cap // 2)))

    kernel = functools.partial(
        _renderer_kernel,
        tile_rows=tr, width=W, distance=float(distance), inv_gamma=1.0 / gamma,
        x0=-1.0, dx=dx, y0=-1.0, dy=dy, y_scale=H / W)

    spec3 = pl.BlockSpec((1, 3, tr, _LANE), lambda b, t: (b, 0, t, 0))
    spec1 = pl.BlockSpec((1, 1, tr, _LANE), lambda b, t: (b, 0, t, 0))

    n_px = bs * p_pad
    cost = pl.CostEstimate(
        flops=80 * n_px,
        transcendentals=12 * n_px,
        bytes_accessed=int(normal_f.size * normal_f.dtype.itemsize
                           + diffuse_f.size * diffuse_f.dtype.itemsize
                           + specular_f.size * specular_f.dtype.itemsize
                           + rough_f.size * rough_f.dtype.itemsize
                           + bs * 3 * p_pad * out_itemsize))

    out = pl.pallas_call(
        kernel,
        out_shape=jax.ShapeDtypeStruct((bs, 3, pr, _LANE), out_dtype),
        grid=(bs, n_tiles),
        in_specs=[spec3, spec3, spec3, spec1],
        out_specs=spec3,
        compiler_params=pltpu.CompilerParams(
            dimension_semantics=("parallel", "parallel"),
            vmem_limit_bytes=vmem_limit),
        cost_estimate=cost,
    )(normal_f, diffuse_f, specular_f, rough_f)

    out = out.reshape(bs, 3, p_pad)
    if p_pad != P:
        out = out[:, :, :P]
    return out.reshape(bs, 3, H, W)


# ---------------------------------------------------------------------------
# Pure-JAX reference mirroring the PyTorch forward (for validation).
# ---------------------------------------------------------------------------
def renderer_reference(brdf_maps, fov=60.0, gamma=2.2):
    normal = brdf_maps["normal"].astype(jnp.float32)
    diffuse = brdf_maps["diffuse"].astype(jnp.float32)
    specular = brdf_maps["specular"].astype(jnp.float32)
    rough = brdf_maps["roughness"].astype(jnp.float32)
    bs, _, H, W = normal.shape

    xs = jnp.linspace(-1.0, 1.0, W, dtype=jnp.float32)
    ys = jnp.linspace(-1.0, 1.0, H, dtype=jnp.float32)
    gy, gx = jnp.meshgrid(ys, xs, indexing="ij")
    aspect = W / H
    px = jnp.broadcast_to(gx, (bs, H, W))
    py = jnp.broadcast_to(-gy / aspect, (bs, H, W))
    pz = jnp.zeros((bs, H, W), jnp.float32)
    image_pos = jnp.stack([px, py, pz], axis=1)

    distance = 1.0 / math.tan((fov / 2.0) / 180.0 * math.pi)
    light_pos = jnp.stack([jnp.zeros((bs, H, W), jnp.float32),
                           jnp.zeros((bs, H, W), jnp.float32),
                           jnp.full((bs, H, W), distance, jnp.float32)], axis=1)
    view_pos = light_pos

    def normalize(v):
        return v / jnp.maximum(jnp.linalg.norm(v, axis=1, keepdims=True), 1e-12)

    def cos_angle(a, b):
        return jnp.clip(jnp.sum(a * b, axis=1, keepdims=True), 0.0, 1.0)

    view_dir = normalize(view_pos - image_pos)
    light_dir = normalize(light_pos - image_pos)
    center_light_dir = jnp.zeros((bs, 3, 1, 1), jnp.float32).at[:, 2].set(1.0)

    half = normalize(0.5 * (light_dir + view_dir))
    cos_half = cos_angle(half, normal)
    cos_light = cos_angle(light_dir, normal)
    cos_view = cos_angle(view_dir, normal)
    cos_diff = cos_angle(half, light_dir)

    alpha2 = rough ** 2
    D = alpha2 ** 2 / (math.pi * (cos_half ** 2 * (alpha2 ** 2 - 1.0) + 1.0) ** 2 + 1e-6)
    fres = specular + (1.0 - specular) * (1.0 - cos_diff) ** 5
    alpha4 = rough ** 4
    G1o = 2.0 / (1.0 + jnp.sqrt(1.0 + alpha4 * (1.0 - cos_view ** 2) / (cos_view ** 2 + 1e-6)))
    G1i = 2.0 / (1.0 + jnp.sqrt(1.0 + alpha4 * (1.0 - cos_light ** 2) / (cos_light ** 2 + 1e-6)))
    refl = D * G1o * G1i * fres / (4.0 * cos_light + 1e-6)

    diff_term = (1.0 / math.pi) * diffuse * cos_angle(light_dir, normal)
    shaded = math.pi * (diff_term + refl)

    light_distance = jnp.linalg.norm(light_pos - image_pos, axis=1, keepdims=True)
    radial = cos_angle(light_dir, center_light_dir)
    shaded = shaded * (1.0 / (light_distance ** 2 + 1e-4))
    shaded = shaded * radial ** 10.0
    shaded = shaded * (2.4 ** 2)
    shaded = shaded ** (1.0 / gamma)
    return jnp.clip(shaded, 0.0, 1.0)


if __name__ == "__main__":
    def make_maps(key, bs, H, W):
        k1, k2, k3, k4 = jax.random.split(key, 4)
        n_xy = jax.random.uniform(k1, (bs, 2, H, W), minval=-0.5, maxval=0.5)
        n_raw = jnp.concatenate([n_xy, jnp.ones((bs, 1, H, W), jnp.float32)], axis=1)
        normal = n_raw / jnp.linalg.norm(n_raw, axis=1, keepdims=True)
        return {
            "normal": normal.astype(jnp.float32),
            "diffuse": jax.random.uniform(k2, (bs, 3, H, W), dtype=jnp.float32),
            "specular": jax.random.uniform(k3, (bs, 3, H, W), dtype=jnp.float32),
            "roughness": jax.random.uniform(k4, (bs, 1, H, W), dtype=jnp.float32,
                                            minval=0.1, maxval=1.0),
        }

    fov, gamma, attenuation = 60.0, 2.2, 2.0
    k1, k2 = jax.random.split(jax.random.PRNGKey(0))

    # Case 1: H*W multiple of 128, bs=2.
    maps = make_maps(k1, 2, 16, 16)
    out = jax.block_until_ready(renderer_forward(maps, fov, gamma, attenuation))
    ref = jax.block_until_ready(renderer_reference(maps, fov, gamma))
    assert out.shape == ref.shape == (2, 3, 16, 16)
    assert bool(jnp.all(jnp.isfinite(out)))
    # Tolerance loosened vs. exact reference: approx reciprocals / rsqrt (deliberate).
    assert jnp.allclose(out, ref, rtol=5e-3, atol=5e-3), (
        f"mismatch vs reference: max abs err {float(jnp.max(jnp.abs(out - ref)))}")

    # Case 2: awkward shape (H*W not a multiple of 128) exercises the padded path.
    maps2 = make_maps(k2, 1, 24, 20)
    out2 = jax.block_until_ready(renderer_forward(maps2, fov, gamma, attenuation))
    ref2 = jax.block_until_ready(renderer_reference(maps2, fov, gamma))
    assert out2.shape == ref2.shape == (1, 3, 24, 20)
    assert jnp.allclose(out2, ref2, rtol=5e-3, atol=5e-3), (
        f"padded-path mismatch: max abs err {float(jnp.max(jnp.abs(out2 - ref2)))}")

    print("KERNEL_OK")
</pallas_src>

<mosaic_0001>
module attributes {stable_mosaic.version = 11 : i64} {
  func.func @_renderer_kernel(%arg0: i32, %arg1: i32, %arg2: memref<1x3x2x128xf32, #tpu.memory_space<vmem>>, %arg3: memref<1x3x2x128xf32, #tpu.memory_space<vmem>>, %arg4: memref<1x3x2x128xf32, #tpu.memory_space<vmem>>, %arg5: memref<1x1x2x128xf32, #tpu.memory_space<vmem>>, %arg6: memref<1x3x2x128xf32, #tpu.memory_space<vmem>>) attributes {dimension_semantics = [#tpu.dimension_semantics<parallel>, #tpu.dimension_semantics<parallel>], iteration_bounds = array<i64: 2, 1>, scalar_prefetch = 0 : i64, scratch_operands = 0 : i64, tpu.core_type = #tpu.core_type<tc>, window_params = [{transform_indices = @transform_0, window_bounds = array<i64: 1, 3, 2, 128>}, {transform_indices = @transform_1, window_bounds = array<i64: 1, 3, 2, 128>}, {transform_indices = @transform_2, window_bounds = array<i64: 1, 3, 2, 128>}, {transform_indices = @transform_3, window_bounds = array<i64: 1, 1, 2, 128>}, {transform_indices = @transform_4, window_bounds = array<i64: 1, 3, 2, 128>}]} {
    %c0 = arith.constant 0 : index
    %c0_0 = arith.constant 0 : index
    %c0_1 = arith.constant 0 : index
    %c0_2 = arith.constant 0 : index
    %0 = vector.load %arg2[%c0, %c0_0, %c0_1, %c0_2] : memref<1x3x2x128xf32, #tpu.memory_space<vmem>>, vector<1x1x2x128xf32>
    %1 = vector.shape_cast %0 : vector<1x1x2x128xf32> to vector<2x128xf32>
    %c0_3 = arith.constant 0 : index
    %c1 = arith.constant 1 : index
    %c0_4 = arith.constant 0 : index
    %c0_5 = arith.constant 0 : index
    %2 = vector.load %arg2[%c0_3, %c1, %c0_4, %c0_5] : memref<1x3x2x128xf32, #tpu.memory_space<vmem>>, vector<1x1x2x128xf32>
    %3 = vector.shape_cast %2 : vector<1x1x2x128xf32> to vector<2x128xf32>
    %c0_6 = arith.constant 0 : index
    %c2 = arith.constant 2 : index
    %c0_7 = arith.constant 0 : index
    %c0_8 = arith.constant 0 : index
    %4 = vector.load %arg2[%c0_6, %c2, %c0_7, %c0_8] : memref<1x3x2x128xf32, #tpu.memory_space<vmem>>, vector<1x1x2x128xf32>
    %5 = vector.shape_cast %4 : vector<1x1x2x128xf32> to vector<2x128xf32>
    %c0_9 = arith.constant 0 : index
    %c0_10 = arith.constant 0 : index
    %c0_11 = arith.constant 0 : index
    %c0_12 = arith.constant 0 : index
    %6 = vector.load %arg5[%c0_9, %c0_10, %c0_11, %c0_12] : memref<1x1x2x128xf32, #tpu.memory_space<vmem>>, vector<1x1x2x128xf32>
    %7 = vector.shape_cast %6 : vector<1x1x2x128xf32> to vector<2x128xf32>
    %8 = tpu.iota {dimensions = array<i32: 0>} : vector<2x128xi32>
    %9 = tpu.iota {dimensions = array<i32: 1>} : vector<2x128xi32>
    %c256_i32 = arith.constant 256 : i32
    %10 = arith.muli %arg1, %c256_i32 : i32
    %c128_i32 = arith.constant 128 : i32
    %11 = vector.broadcast %c128_i32 : i32 to vector<2x128xi32>
    %12 = arith.muli %8, %11 : vector<2x128xi32>
    %13 = vector.broadcast %10 : i32 to vector<2x128xi32>
    %14 = arith.addi %13, %12 : vector<2x128xi32>
    %15 = arith.addi %14, %9 : vector<2x128xi32>
    %16 = arith.sitofp %15 : vector<2x128xi32> to vector<2x128xf32>
    %cst = arith.constant 6.250000e-02 : f32
    %17 = vector.broadcast %cst : f32 to vector<2x128xf32>
    %18 = arith.mulf %16, %17 : vector<2x128xf32>
    %19 = math.floor %18 : vector<2x128xf32>
    %cst_13 = arith.constant 1.000000e+00 : f32
    %20 = vector.broadcast %cst_13 : f32 to vector<2x128xf32>
    %21 = arith.addf %19, %20 : vector<2x128xf32>
    %cst_14 = arith.constant 1.600000e+01 : f32
    %22 = vector.broadcast %cst_14 : f32 to vector<2x128xf32>
    %23 = arith.mulf %21, %22 : vector<2x128xf32>
    %24 = arith.cmpf ole, %23, %16 : vector<2x128xf32>
    %cst_15 = arith.constant 1.000000e+00 : f32
    %25 = vector.broadcast %cst_15 : f32 to vector<2x128xf32>
    %26 = arith.addf %19, %25 : vector<2x128xf32>
    %27 = arith.select %24, %26, %19 : vector<2x128xi1>, vector<2x128xf32>
    %cst_16 = arith.constant 1.600000e+01 : f32
    %28 = vector.broadcast %cst_16 : f32 to vector<2x128xf32>
    %29 = arith.mulf %27, %28 : vector<2x128xf32>
    %30 = arith.cmpf ogt, %29, %16 : vector<2x128xf32>
    %cst_17 = arith.constant 1.000000e+00 : f32
    %31 = vector.broadcast %cst_17 : f32 to vector<2x128xf32>
    %32 = arith.subf %27, %31 : vector<2x128xf32>
    %33 = arith.select %30, %32, %27 : vector<2x128xi1>, vector<2x128xf32>
    %cst_18 = arith.constant 1.600000e+01 : f32
    %34 = vector.broadcast %cst_18 : f32 to vector<2x128xf32>
    %35 = arith.mulf %33, %34 : vector<2x128xf32>
    %36 = arith.subf %16, %35 : vector<2x128xf32>
    %cst_19 = arith.constant 0.13333334 : f32
    %37 = vector.broadcast %cst_19 : f32 to vector<2x128xf32>
    %38 = arith.mulf %37, %36 : vector<2x128xf32>
    %cst_20 = arith.constant -1.000000e+00 : f32
    %39 = vector.broadcast %cst_20 : f32 to vector<2x128xf32>
    %40 = arith.addf %39, %38 : vector<2x128xf32>
    %cst_21 = arith.constant 0.13333334 : f32
    %41 = vector.broadcast %cst_21 : f32 to vector<2x128xf32>
    %42 = arith.mulf %41, %33 : vector<2x128xf32>
    %cst_22 = arith.constant -1.000000e+00 : f32
    %43 = vector.broadcast %cst_22 : f32 to vector<2x128xf32>
    %44 = arith.addf %43, %42 : vector<2x128xf32>
    %cst_23 = arith.constant 0.000000e+00 : f32
    %45 = vector.broadcast %cst_23 : f32 to vector<2x128xf32>
    %46 = arith.subf %45, %44 : vector<2x128xf32>
    %cst_24 = arith.constant 1.000000e+00 : f32
    %47 = vector.broadcast %cst_24 : f32 to vector<2x128xf32>
    %48 = arith.mulf %46, %47 : vector<2x128xf32>
    %49 = arith.mulf %40, %40 : vector<2x128xf32>
    %50 = arith.mulf %48, %48 : vector<2x128xf32>
    %51 = arith.addf %49, %50 : vector<2x128xf32>
    %cst_25 = arith.constant 3.000000e+00 : f32
    %52 = vector.broadcast %cst_25 : f32 to vector<2x128xf32>
    %53 = arith.addf %51, %52 : vector<2x128xf32>
    %54 = math.rsqrt %53 : vector<2x128xf32>
    %cst_26 = arith.constant 0.000000e+00 : f32
    %55 = vector.broadcast %cst_26 : f32 to vector<2x128xf32>
    %56 = arith.subf %55, %40 : vector<2x128xf32>
    %57 = arith.mulf %56, %1 : vector<2x128xf32>
    %cst_27 = arith.constant 0.000000e+00 : f32
    %58 = vector.broadcast %cst_27 : f32 to vector<2x128xf32>
    %59 = arith.subf %58, %48 : vector<2x128xf32>
    %60 = arith.mulf %59, %3 : vector<2x128xf32>
    %61 = arith.addf %57, %60 : vector<2x128xf32>
    %cst_28 = arith.constant 1.73205078 : f32
    %62 = vector.broadcast %cst_28 : f32 to vector<2x128xf32>
    %63 = arith.mulf %62, %5 : vector<2x128xf32>
    %64 = arith.addf %61, %63 : vector<2x128xf32>
    %65 = arith.mulf %64, %54 : vector<2x128xf32>
    %cst_29 = arith.constant 0.000000e+00 : f32
    %cst_30 = arith.constant 1.000000e+00 : f32
    %66 = vector.broadcast %cst_29 : f32 to vector<2x128xf32>
    %67 = arith.maximumf %66, %65 : vector<2x128xf32>
    %68 = vector.broadcast %cst_30 : f32 to vector<2x128xf32>
    %69 = arith.minimumf %68, %67 : vector<2x128xf32>
    %70 = arith.mulf %69, %69 : vector<2x128xf32>
    %71 = arith.mulf %7, %7 : vector<2x128xf32>
    %72 = arith.mulf %71, %71 : vector<2x128xf32>
    %cst_31 = arith.constant 1.000000e+00 : f32
    %73 = vector.broadcast %cst_31 : f32 to vector<2x128xf32>
    %74 = arith.subf %73, %70 : vector<2x128xf32>
    %75 = arith.mulf %72, %74 : vector<2x128xf32>
    %cst_32 = arith.constant 9.99999997E-7 : f32
    %76 = vector.broadcast %cst_32 : f32 to vector<2x128xf32>
    %77 = arith.addf %70, %76 : vector<2x128xf32>
    %78 = tpu.reciprocal %77 {approx = true} : vector<2x128xf32> -> vector<2x128xf32>
    %79 = arith.mulf %75, %78 : vector<2x128xf32>
    %cst_33 = arith.constant 1.000000e+00 : f32
    %80 = vector.broadcast %cst_33 : f32 to vector<2x128xf32>
    %81 = arith.addf %80, %79 : vector<2x128xf32>
    %82 = math.sqrt %81 : vector<2x128xf32>
    %cst_34 = arith.constant 1.000000e+00 : f32
    %83 = vector.broadcast %cst_34 : f32 to vector<2x128xf32>
    %84 = arith.addf %83, %82 : vector<2x128xf32>
    %85 = tpu.reciprocal %84 {approx = true} : vector<2x128xf32> -> vector<2x128xf32>
    %cst_35 = arith.constant 4.000000e+00 : f32
    %86 = vector.broadcast %cst_35 : f32 to vector<2x128xf32>
    %87 = arith.mulf %86, %85 : vector<2x128xf32>
    %88 = arith.mulf %87, %85 : vector<2x128xf32>
    %cst_36 = arith.constant 1.000000e+00 : f32
    %89 = vector.broadcast %cst_36 : f32 to vector<2x128xf32>
    %90 = arith.subf %72, %89 : vector<2x128xf32>
    %91 = arith.mulf %70, %90 : vector<2x128xf32>
    %cst_37 = arith.constant 1.000000e+00 : f32
    %92 = vector.broadcast %cst_37 : f32 to vector<2x128xf32>
    %93 = arith.addf %91, %92 : vector<2x128xf32>
    %cst_38 = arith.constant 3.14159274 : f32
    %94 = vector.broadcast %cst_38 : f32 to vector<2x128xf32>
    %95 = arith.mulf %94, %93 : vector<2x128xf32>
    %96 = arith.mulf %95, %93 : vector<2x128xf32>
    %cst_39 = arith.constant 9.99999997E-7 : f32
    %97 = vector.broadcast %cst_39 : f32 to vector<2x128xf32>
    %98 = arith.addf %96, %97 : vector<2x128xf32>
    %cst_40 = arith.constant 4.000000e+00 : f32
    %99 = vector.broadcast %cst_40 : f32 to vector<2x128xf32>
    %100 = arith.mulf %99, %69 : vector<2x128xf32>
    %cst_41 = arith.constant 9.99999997E-7 : f32
    %101 = vector.broadcast %cst_41 : f32 to vector<2x128xf32>
    %102 = arith.addf %100, %101 : vector<2x128xf32>
    %103 = arith.mulf %98, %102 : vector<2x128xf32>
    %cst_42 = arith.constant 3.14159274 : f32
    %104 = vector.broadcast %cst_42 : f32 to vector<2x128xf32>
    %105 = arith.mulf %104, %72 : vector<2x128xf32>
    %106 = arith.mulf %105, %88 : vector<2x128xf32>
    %107 = tpu.reciprocal %103 {approx = true} : vector<2x128xf32> -> vector<2x128xf32>
    %108 = arith.mulf %106, %107 : vector<2x128xf32>
    %cst_43 = arith.constant 9.99999974E-5 : f32
    %109 = vector.broadcast %cst_43 : f32 to vector<2x128xf32>
    %110 = arith.addf %53, %109 : vector<2x128xf32>
    %111 = tpu.reciprocal %110 {approx = true} : vector<2x128xf32> -> vector<2x128xf32>
    %cst_44 = arith.constant 1.73205078 : f32
    %112 = vector.broadcast %cst_44 : f32 to vector<2x128xf32>
    %113 = arith.mulf %112, %54 : vector<2x128xf32>
    %cst_45 = arith.constant 0.000000e+00 : f32
    %cst_46 = arith.constant 1.000000e+00 : f32
    %114 = vector.broadcast %cst_45 : f32 to vector<2x128xf32>
    %115 = arith.maximumf %114, %113 : vector<2x128xf32>
    %116 = vector.broadcast %cst_46 : f32 to vector<2x128xf32>
    %117 = arith.minimumf %116, %115 : vector<2x128xf32>
    %118 = arith.mulf %117, %117 : vector<2x128xf32>
    %119 = arith.mulf %118, %118 : vector<2x128xf32>
    %120 = arith.mulf %119, %119 : vector<2x128xf32>
    %121 = arith.mulf %120, %118 : vector<2x128xf32>
    %122 = arith.mulf %111, %121 : vector<2x128xf32>
    %cst_47 = arith.constant 5.760000e+00 : f32
    %123 = vector.broadcast %cst_47 : f32 to vector<2x128xf32>
    %124 = arith.mulf %122, %123 : vector<2x128xf32>
    %125 = arith.mulf %69, %124 : vector<2x128xf32>
    %126 = arith.mulf %108, %124 : vector<2x128xf32>
    %c0_48 = arith.constant 0 : index
    %c0_49 = arith.constant 0 : index
    %c0_50 = arith.constant 0 : index
    %c0_51 = arith.constant 0 : index
    %127 = vector.load %arg3[%c0_48, %c0_49, %c0_50, %c0_51] : memref<1x3x2x128xf32, #tpu.memory_space<vmem>>, vector<1x1x2x128xf32>
    %128 = vector.shape_cast %127 : vector<1x1x2x128xf32> to vector<2x128xf32>
    %129 = arith.mulf %128, %125 : vector<2x128xf32>
    %c0_52 = arith.constant 0 : index
    %c0_53 = arith.constant 0 : index
    %c0_54 = arith.constant 0 : index
    %c0_55 = arith.constant 0 : index
    %130 = vector.load %arg4[%c0_52, %c0_53, %c0_54, %c0_55] : memref<1x3x2x128xf32, #tpu.memory_space<vmem>>, vector<1x1x2x128xf32>
    %131 = vector.shape_cast %130 : vector<1x1x2x128xf32> to vector<2x128xf32>
    %132 = arith.mulf %131, %126 : vector<2x128xf32>
    %133 = arith.addf %129, %132 : vector<2x128xf32>
    %cst_56 = arith.constant 0.454545468 : f32
    %134 = vector.broadcast %cst_56 : f32 to vector<2x128xf32>
    %135 = math.powf %133, %134 : vector<2x128xf32>
    %cst_57 = arith.constant 0.000000e+00 : f32
    %cst_58 = arith.constant 1.000000e+00 : f32
    %136 = vector.broadcast %cst_57 : f32 to vector<2x128xf32>
    %137 = arith.maximumf %136, %135 : vector<2x128xf32>
    %138 = vector.broadcast %cst_58 : f32 to vector<2x128xf32>
    %139 = arith.minimumf %138, %137 : vector<2x128xf32>
    %c0_59 = arith.constant 0 : index
    %c0_60 = arith.constant 0 : index
    %c0_61 = arith.constant 0 : index
    %c0_62 = arith.constant 0 : index
    %140 = vector.load %arg6[%c0_59, %c0_60, %c0_61, %c0_62] : memref<1x3x2x128xf32, #tpu.memory_space<vmem>>, vector<1x1x2x128xf32>
    %141 = vector.shape_cast %140 : vector<1x1x2x128xf32> to vector<2x128xf32>
    %142 = vector.shape_cast %139 : vector<2x128xf32> to vector<1x1x2x128xf32>
    tpu.vector_store %arg6[%c0_59, %c0_60, %c0_61, %c0_62], %142 {strides = array<i32>} : memref<1x3x2x128xf32, #tpu.memory_space<vmem>>, vector<1x1x2x128xf32>,
    %c0_63 = arith.constant 0 : index
    %c1_64 = arith.constant 1 : index
    %c0_65 = arith.constant 0 : index
    %c0_66 = arith.constant 0 : index
    %143 = vector.load %arg3[%c0_63, %c1_64, %c0_65, %c0_66] : memref<1x3x2x128xf32, #tpu.memory_space<vmem>>, vector<1x1x2x128xf32>
    %144 = vector.shape_cast %143 : vector<1x1x2x128xf32> to vector<2x128xf32>
    %145 = arith.mulf %144, %125 : vector<2x128xf32>
    %c0_67 = arith.constant 0 : index
    %c1_68 = arith.constant 1 : index
    %c0_69 = arith.constant 0 : index
    %c0_70 = arith.constant 0 : index
    %146 = vector.load %arg4[%c0_67, %c1_68, %c0_69, %c0_70] : memref<1x3x2x128xf32, #tpu.memory_space<vmem>>, vector<1x1x2x128xf32>
    %147 = vector.shape_cast %146 : vector<1x1x2x128xf32> to vector<2x128xf32>
    %148 = arith.mulf %147, %126 : vector<2x128xf32>
    %149 = arith.addf %145, %148 : vector<2x128xf32>
    %cst_71 = arith.constant 0.454545468 : f32
    %150 = vector.broadcast %cst_71 : f32 to vector<2x128xf32>
    %151 = math.powf %149, %150 : vector<2x128xf32>
    %cst_72 = arith.constant 0.000000e+00 : f32
    %cst_73 = arith.constant 1.000000e+00 : f32
    %152 = vector.broadcast %cst_72 : f32 to vector<2x128xf32>
    %153 = arith.maximumf %152, %151 : vector<2x128xf32>
    %154 = vector.broadcast %cst_73 : f32 to vector<2x128xf32>
    %155 = arith.minimumf %154, %153 : vector<2x128xf32>
    %c0_74 = arith.constant 0 : index
    %c1_75 = arith.constant 1 : index
    %c0_76 = arith.constant 0 : index
    %c0_77 = arith.constant 0 : index
    %156 = vector.load %arg6[%c0_74, %c1_75, %c0_76, %c0_77] : memref<1x3x2x128xf32, #tpu.memory_space<vmem>>, vector<1x1x2x128xf32>
    %157 = vector.shape_cast %156 : vector<1x1x2x128xf32> to vector<2x128xf32>
    %158 = vector.shape_cast %155 : vector<2x128xf32> to vector<1x1x2x128xf32>
    tpu.vector_store %arg6[%c0_74, %c1_75, %c0_76, %c0_77], %158 {strides = array<i32>} : memref<1x3x2x128xf32, #tpu.memory_space<vmem>>, vector<1x1x2x128xf32>,
    %c0_78 = arith.constant 0 : index
    %c2_79 = arith.constant 2 : index
    %c0_80 = arith.constant 0 : index
    %c0_81 = arith.constant 0 : index
    %159 = vector.load %arg3[%c0_78, %c2_79, %c0_80, %c0_81] : memref<1x3x2x128xf32, #tpu.memory_space<vmem>>, vector<1x1x2x128xf32>
    %160 = vector.shape_cast %159 : vector<1x1x2x128xf32> to vector<2x128xf32>
    %161 = arith.mulf %160, %125 : vector<2x128xf32>
    %c0_82 = arith.constant 0 : index
    %c2_83 = arith.constant 2 : index
    %c0_84 = arith.constant 0 : index
    %c0_85 = arith.constant 0 : index
    %162 = vector.load %arg4[%c0_82, %c2_83, %c0_84, %c0_85] : memref<1x3x2x128xf32, #tpu.memory_space<vmem>>, vector<1x1x2x128xf32>
    %163 = vector.shape_cast %162 : vector<1x1x2x128xf32> to vector<2x128xf32>
    %164 = arith.mulf %163, %126 : vector<2x128xf32>
    %165 = arith.addf %161, %164 : vector<2x128xf32>
    %cst_86 = arith.constant 0.454545468 : f32
    %166 = vector.broadcast %cst_86 : f32 to vector<2x128xf32>
    %167 = math.powf %165, %166 : vector<2x128xf32>
    %cst_87 = arith.constant 0.000000e+00 : f32
    %cst_88 = arith.constant 1.000000e+00 : f32
    %168 = vector.broadcast %cst_87 : f32 to vector<2x128xf32>
    %169 = arith.maximumf %168, %167 : vector<2x128xf32>
    %170 = vector.broadcast %cst_88 : f32 to vector<2x128xf32>
    %171 = arith.minimumf %170, %169 : vector<2x128xf32>
    %c0_89 = arith.constant 0 : index
    %c2_90 = arith.constant 2 : index
    %c0_91 = arith.constant 0 : index
    %c0_92 = arith.constant 0 : index
    %172 = vector.load %arg6[%c0_89, %c2_90, %c0_91, %c0_92] : memref<1x3x2x128xf32, #tpu.memory_space<vmem>>, vector<1x1x2x128xf32>
    %173 = vector.shape_cast %172 : vector<1x1x2x128xf32> to vector<2x128xf32>
    %174 = vector.shape_cast %171 : vector<2x128xf32> to vector<1x1x2x128xf32>
    tpu.vector_store %arg6[%c0_89, %c2_90, %c0_91, %c0_92], %174 {strides = array<i32>} : memref<1x3x2x128xf32, #tpu.memory_space<vmem>>, vector<1x1x2x128xf32>,
    return
  }
  func.func @transform_0(%arg0: i32, %arg1: i32) -> (i32, i32, i32, i32) {
    %c0_i32 = arith.constant 0 : i32
    %c0_i32_0 = arith.constant 0 : i32
    %c0_i32_1 = arith.constant 0 : i32
    return %arg0, %c0_i32, %arg1, %c0_i32_0 : i32, i32, i32, i32
  }
  func.func @transform_1(%arg0: i32, %arg1: i32) -> (i32, i32, i32, i32) {
    %c0_i32 = arith.constant 0 : i32
    %c0_i32_0 = arith.constant 0 : i32
    %c0_i32_1 = arith.constant 0 : i32
    return %arg0, %c0_i32, %arg1, %c0_i32_0 : i32, i32, i32, i32
  }
  func.func @transform_2(%arg0: i32, %arg1: i32) -> (i32, i32, i32, i32) {
    %c0_i32 = arith.constant 0 : i32
    %c0_i32_0 = arith.constant 0 : i32
    %c0_i32_1 = arith.constant 0 : i32
    return %arg0, %c0_i32, %arg1, %c0_i32_0 : i32, i32, i32, i32
  }
  func.func @transform_3(%arg0: i32, %arg1: i32) -> (i32, i32, i32, i32) {
    %c0_i32 = arith.constant 0 : i32
    %c0_i32_0 = arith.constant 0 : i32
    %c0_i32_1 = arith.constant 0 : i32
    return %arg0, %c0_i32, %arg1, %c0_i32_0 : i32, i32, i32, i32
  }
  func.func @transform_4(%arg0: i32, %arg1: i32) -> (i32, i32, i32, i32) {
    %c0_i32 = arith.constant 0 : i32
    %c0_i32_0 = arith.constant 0 : i32
    %c0_i32_1 = arith.constant 0 : i32
    return %arg0, %c0_i32, %arg1, %c0_i32_0 : i32, i32, i32, i32
  }
}

</mosaic_0001>

<llo_original>
// kernel: tpu_custom_call.1
$region0: #{tpu_custom_call.1}
  #allocation0 [shape = 'u32[]', space=smem, size = 0x4, offset = 0x4, fixed_abs, tag = 'smem constant byte address 0x4 - core index']
  #allocation1 [shape = 'u32[144,128]{1,0:T(1,128)}', space=vmem, size = 0x12000, scoped, tag = 'internal scratch']
  %s0 = inlined_call_operand.hbm [shape: f32[2,3,2,128], index: 0, kind: input, shape index: {}]
  %s1 = inlined_call_operand.hbm [shape: f32[2,3,2,128], index: 1, kind: input, shape index: {}]
  %s2 = inlined_call_operand.hbm [shape: f32[2,3,2,128], index: 2, kind: input, shape index: {}]
  %s3 = inlined_call_operand.hbm [shape: f32[2,1,2,128], index: 3, kind: input, shape index: {}]
  %s4 = inlined_call_operand.hbm [shape: f32[2,3,2,128], index: 4, kind: output, shape index: {}]
  %s5 = sld [smem:[#allocation0]]
  $region65: #{tpu_custom_call.1} parent=0
    _
  %s7 = ssub.s32 1, %s5
  %s8 = scalar_select 0, %s7, %s5
  $region1: #{tpu_custom_call.1} parent=0
    #allocation2 [shape = 'u8[6144]{0}', space=vmem, size = 0x1800, scoped, tag = 'input window, operand 0']
    #allocation3 [shape = 's32[2]{0}', space=sflag, size = 0x8, scoped, tag = 'scoped memory for tpu_custom_call.1']
    #allocation4 [shape = 's32[2]{0}', space=sflag, size = 0x8, scoped, tag = 'scoped memory for tpu_custom_call.1']
    #allocation5 [shape = 'u8[6144]{0}', space=vmem, size = 0x1800, scoped, tag = 'input window, operand 1']
    #allocation6 [shape = 's32[2]{0}', space=sflag, size = 0x8, scoped, tag = 'scoped memory for tpu_custom_call.1']
    #allocation7 [shape = 'u8[6144]{0}', space=vmem, size = 0x1800, scoped, tag = 'input window, operand 2']
    #allocation8 [shape = 'u8[2048]{0}', space=vmem, size = 0x800, scoped, tag = 'input window, operand 3']
    #allocation9 [shape = 's32[2]{0}', space=sflag, size = 0x8, scoped, tag = 'scoped memory for tpu_custom_call.1']
    #allocation10 [shape = 'u8[6144]{0}', space=vmem, size = 0x1800, scoped, tag = 'output window, operand 0']
    %9 = vsyncpa [#allocation3], 0
    %s10 = scalar_lea.sflag [#allocation3], 1
    %11 = vsyncpa %s10, 0
    %12 = vsyncpa [#allocation6], 0
    %s13 = scalar_lea.sflag [#allocation6], 1
    %14 = vsyncpa %s13, 0
    %15 = vsyncpa [#allocation9], 0
    %s16 = scalar_lea.sflag [#allocation9], 1
    %17 = vsyncpa %s16, 0
    %18 = vsyncpa [#allocation4], 0
    %s19 = scalar_lea.sflag [#allocation4], 1
    %20 = vsyncpa %s19, 0
    loop: start=0, step=1, limit=4
    $region2: #{tpu_custom_call.1} parent=1 // loop_pre_header
      _
    $region3: #{tpu_custom_call.1} parent=1 // loop_header
      %s22 = sphi 0, %s26
      %p23 = scmp.ge.s32.totalorder %s22, 4
      %s29 = sphi 0, %s41
      %s30 = sphi 0, %s37
      %s31 = sphi 0, %s29
      %s32 = sphi 0, %s30
      %s33 = sphi 0, %s31
      %s34 = sphi 0, %s32
      %s46 = sphi 0, %s48
      %s49 = sphi 0, %s46
      %s50 = sphi 0, %s49
      %s66 = sphi 0, %s50
      %s74 = sphi 0, %s76
      %s77 = sphi 0, %s74
      %s78 = sphi 0, %s77
      %s94 = sphi 0, %s78
      %s102 = sphi 0, %s104
      %s105 = sphi 0, %s102
      %s106 = sphi 0, %s105
      %s122 = sphi 0, %s106
      %s130 = sphi 0, %s132
      %s133 = sphi 0, %s130
      %s134 = sphi 0, %s133
      %s150 = sphi 0, %s134
      %s158 = sphi 0, %s160
      %s161 = sphi 0, %s158
      %s162 = sphi 0, %s161
      %s178 = sphi 0, %s162
    $region4: #{tpu_custom_call.1} parent=1 // loop_header_branch
      %25 = sbr.rel (%p23) target = $region8
    $region5: #{tpu_custom_call.1} parent=1 // loop_body
      %s27 = ssub.s32 %s22, 1
      %s28 = ssub.s32 %s22, 2
      %s35 = sadd.s32 1, %s30
      %p36 = scmp.ge.s32.totalorder %s35, 1
      %s37 = scalar_select %p36, 0, %s35
      %s38 = sadd.s32 1, %s29
      %s39 = scalar_select %p36, %s38, %s29
      %p40 = scmp.ge.s32.totalorder %s39, 2
      %s41 = scalar_select %p40, 0, %s39
      %s42 = ssub.s32 %s29, %s41
      %s43 = ssub.s32 %s30, %s37
      %s44 = sor.u32 %s42, %s43
      %p45 = scmp.eq.s32.totalorder %s44, 0
      %s47 = sadd.s32 %s46, 1
      %s48 = scalar_select %p45, %s46, %s47
      %p51 = pneg %p45
      %p52 = scmp.eq.s32.totalorder %s22, 1
      %p53 = por %p51, %p52
      %p54 = scmp.ne.s32.totalorder %s46, %s49
      %p55 = scmp.eq.s32.totalorder %s22, 0
      %p56 = por %p54, %p55
      %p57 = scmp.ne.s32.totalorder %s46, %s49
      %p58 = scmp.eq.s32.totalorder %s27, 1
      %p59 = por %p57, %p58
      %p60 = scmp.ne.s32.totalorder %s49, %s50
      %p61 = scmp.eq.s32.totalorder %s27, 0
      %p62 = por %p60, %p61
      %p63 = scmp.ne.s32.totalorder %s49, %s50
      %p64 = scmp.eq.s32.totalorder %s28, 1
      %p65 = por %p63, %p64
      %p67 = scmp.ne.s32.totalorder %s50, %s66
      %p68 = scmp.eq.s32.totalorder %s28, 0
      %p69 = por %p67, %p68
      %s70 = ssub.s32 %s29, %s41
      %s71 = ssub.s32 %s30, %s37
      %s72 = sor.u32 %s70, %s71
      %p73 = scmp.eq.s32.totalorder %s72, 0
      %s75 = sadd.s32 %s74, 1
      %s76 = scalar_select %p73, %s74, %s75
      %p79 = pneg %p73
      %p80 = scmp.eq.s32.totalorder %s22, 1
      %p81 = por %p79, %p80
      %p82 = scmp.ne.s32.totalorder %s74, %s77
      %p83 = scmp.eq.s32.totalorder %s22, 0
      %p84 = por %p82, %p83
      %p85 = scmp.ne.s32.totalorder %s74, %s77
      %p86 = scmp.eq.s32.totalorder %s27, 1
      %p87 = por %p85, %p86
      %p88 = scmp.ne.s32.totalorder %s77, %s78
      %p89 = scmp.eq.s32.totalorder %s27, 0
      %p90 = por %p88, %p89
      %p91 = scmp.ne.s32.totalorder %s77, %s78
      %p92 = scmp.eq.s32.totalorder %s28, 1
      %p93 = por %p91, %p92
      %p95 = scmp.ne.s32.totalorder %s78, %s94
      %p96 = scmp.eq.s32.totalorder %s28, 0
      %p97 = por %p95, %p96
      %s98 = ssub.s32 %s29, %s41
      %s99 = ssub.s32 %s30, %s37
      %s100 = sor.u32 %s98, %s99
      %p101 = scmp.eq.s32.totalorder %s100, 0
      %s103 = sadd.s32 %s102, 1
      %s104 = scalar_select %p101, %s102, %s103
      %p107 = pneg %p101
      %p108 = scmp.eq.s32.totalorder %s22, 1
      %p109 = por %p107, %p108
      %p110 = scmp.ne.s32.totalorder %s102, %s105
      %p111 = scmp.eq.s32.totalorder %s22, 0
      %p112 = por %p110, %p111
      %p113 = scmp.ne.s32.totalorder %s102, %s105
      %p114 = scmp.eq.s32.totalorder %s27, 1
      %p115 = por %p113, %p114
      %p116 = scmp.ne.s32.totalorder %s105, %s106
      %p117 = scmp.eq.s32.totalorder %s27, 0
      %p118 = por %p116, %p117
      %p119 = scmp.ne.s32.totalorder %s105, %s106
      %p120 = scmp.eq.s32.totalorder %s28, 1
      %p121 = por %p119, %p120
      %p123 = scmp.ne.s32.totalorder %s106, %s122
      %p124 = scmp.eq.s32.totalorder %s28, 0
      %p125 = por %p123, %p124
      %s126 = ssub.s32 %s29, %s41
      %s127 = ssub.s32 %s30, %s37
      %s128 = sor.u32 %s126, %s127
      %p129 = scmp.eq.s32.totalorder %s128, 0
      %s131 = sadd.s32 %s130, 1
      %s132 = scalar_select %p129, %s130, %s131
      %p135 = pneg %p129
      %p136 = scmp.eq.s32.totalorder %s22, 1
      %p137 = por %p135, %p136
      %p138 = scmp.ne.s32.totalorder %s130, %s133
      %p139 = scmp.eq.s32.totalorder %s22, 0
      %p140 = por %p138, %p139
      %p141 = scmp.ne.s32.totalorder %s130, %s133
      %p142 = scmp.eq.s32.totalorder %s27, 1
      %p143 = por %p141, %p142
      %p144 = scmp.ne.s32.totalorder %s133, %s134
      %p145 = scmp.eq.s32.totalorder %s27, 0
      %p146 = por %p144, %p145
      %p147 = scmp.ne.s32.totalorder %s133, %s134
      %p148 = scmp.eq.s32.totalorder %s28, 1
      %p149 = por %p147, %p148
      %p151 = scmp.ne.s32.totalorder %s134, %s150
      %p152 = scmp.eq.s32.totalorder %s28, 0
      %p153 = por %p151, %p152
      %s154 = ssub.s32 %s29, %s41
      %s155 = ssub.s32 %s30, %s37
      %s156 = sor.u32 %s154, %s155
      %p157 = scmp.eq.s32.totalorder %s156, 0
      %s159 = sadd.s32 %s158, 1
      %s160 = scalar_select %p157, %s158, %s159
      %p163 = pneg %p157
      %p164 = scmp.eq.s32.totalorder %s22, 1
      %p165 = por %p163, %p164
      %p166 = scmp.ne.s32.totalorder %s158, %s161
      %p167 = scmp.eq.s32.totalorder %s22, 0
      %p168 = por %p166, %p167
      %p169 = scmp.ne.s32.totalorder %s158, %s161
      %p170 = scmp.eq.s32.totalorder %s27, 1
      %p171 = por %p169, %p170
      %p172 = scmp.ne.s32.totalorder %s161, %s162
      %p173 = scmp.eq.s32.totalorder %s27, 0
      %p174 = por %p172, %p173
      %p175 = scmp.ne.s32.totalorder %s161, %s162
      %p176 = scmp.eq.s32.totalorder %s28, 1
      %p177 = por %p175, %p176
      %p179 = scmp.ne.s32.totalorder %s162, %s178
      %p180 = scmp.eq.s32.totalorder %s28, 0
      %p181 = por %p179, %p180
      %p182 = scmp.le.s32.totalorder 1, %s22
      %p183 = scmp.lt.s32.totalorder %s22, 3
      %p184 = pnand %p182, %p183
      %p185 = pneg %p184
      // Predicated region
      $region9: #{tpu_custom_call.1} parent=5 // pred_check
        _
      $region10: #{tpu_custom_call.1} parent=5 // pred_check_branch
        %187 = sbr.rel (%p184) target = $region12
      $region11: #{tpu_custom_call.1} parent=5 // pred_region
        %s188 = ssub.s32 %s22, 1
      $region12: #{tpu_custom_call.1} parent=5 // pred_fallthru
        _
      %p189 = scmp.lt.s32.totalorder %s22, 2
      // Predicated region
      $region13: #{tpu_custom_call.1} parent=5 // pred_check
        %p190 = pneg %p189
      $region14: #{tpu_custom_call.1} parent=5 // pred_check_branch
        %192 = sbr.rel (%p190) target = $region16
      $region15: #{tpu_custom_call.1} parent=5 // pred_region
        // Predicated region
        $region17: #{tpu_custom_call.1} parent=15 // pred_check
          %p193 = pneg %p56
        $region18: #{tpu_custom_call.1} parent=15 // pred_check_branch
          %195 = sbr.rel (%p193) target = $region20
        $region19: #{tpu_custom_call.1} parent=15 // pred_region
          %s196 = sand.u32 %s46, 1
          %s197 = scalar_lea.sflag [#allocation3], %s196
          %s198 = sand.u32 %s46, 1
          %s199 = smul.addr %s198, 6
          %s200 = scalar_lea.vmem [#allocation2], %s199
          %s202 = ssub.s32 96, 96
          %203 = vsyncadd %s197, %s202
          %s204 = smul.addr %s29, 3
          %s205 = sadd.s32 %s30, %s204
          %s206 = smul.addr %s205, 32
          %s207 = scalar_lea.hbm %s0, %s206
          %s208 = sshll.u32 %s200, 4
          %s209 = int_to_ptr.vmem [resolvable:$true] %s208
          %214 = dma.hbm_to_vmem [thread:$0]  %s207, 96, %s209, %s197, 32, 32, 2
        $region20: #{tpu_custom_call.1} parent=15 // pred_fallthru
          _
        // Predicated region
        $region21: #{tpu_custom_call.1} parent=15 // pred_check
          %p215 = pneg %p84
        $region22: #{tpu_custom_call.1} parent=15 // pred_check_branch
          %217 = sbr.rel (%p215) target = $region24
        $region23: #{tpu_custom_call.1} parent=15 // pred_region
          %s218 = sand.u32 %s22, 1
          %s219 = scalar_lea.sflag [#allocation6], %s218
          %s220 = sand.u32 %s74, 1
          %s221 = smul.addr %s220, 6
          %s222 = scalar_lea.vmem [#allocation5], %s221
          %s224 = ssub.s32 96, 96
          %225 = vsyncadd %s219, %s224
          %s226 = smul.addr %s29, 3
          %s227 = sadd.s32 %s30, %s226
          %s228 = smul.addr %s227, 32
          %s229 = scalar_lea.hbm %s1, %s228
          %s230 = sshll.u32 %s222, 4
          %s231 = int_to_ptr.vmem [resolvable:$true] %s230
          %236 = dma.hbm_to_vmem [thread:$0]  %s229, 96, %s231, %s219, 32, 32, 2
        $region24: #{tpu_custom_call.1} parent=15 // pred_fallthru
          _
        // Predicated region
        $region25: #{tpu_custom_call.1} parent=15 // pred_check
          %p237 = pneg %p112
        $region26: #{tpu_custom_call.1} parent=15 // pred_check_branch
          %239 = sbr.rel (%p237) target = $region28
        $region27: #{tpu_custom_call.1} parent=15 // pred_region
          %s240 = sand.u32 %s22, 1
          %s241 = scalar_lea.sflag [#allocation6], %s240
          %s242 = sand.u32 %s102, 1
          %s243 = smul.addr %s242, 6
          %s244 = scalar_lea.vmem [#allocation7], %s243
          %s246 = ssub.s32 96, 96
          %247 = vsyncadd %s241, %s246
          %s248 = smul.addr %s29, 3
          %s249 = sadd.s32 %s30, %s248
          %s250 = smul.addr %s249, 32
          %s251 = scalar_lea.hbm %s2, %s250
          %s252 = sshll.u32 %s244, 4
          %s253 = int_to_ptr.vmem [resolvable:$true] %s252
          %258 = dma.hbm_to_vmem [thread:$0]  %s251, 96, %s253, %s241, 32, 32, 2
        $region28: #{tpu_custom_call.1} parent=15 // pred_fallthru
          _
        // Predicated region
        $region29: #{tpu_custom_call.1} parent=15 // pred_check
          %p259 = pneg %p140
        $region30: #{tpu_custom_call.1} parent=15 // pred_check_branch
          %261 = sbr.rel (%p259) target = $region32
        $region31: #{tpu_custom_call.1} parent=15 // pred_region
          %s262 = sand.u32 %s130, 1
          %s263 = scalar_lea.sflag [#allocation9], %s262
          %s264 = sand.u32 %s130, 1
          %s265 = smul.addr %s264, 2
          %s266 = scalar_lea.vmem [#allocation8], %s265
          %s268 = ssub.s32 32, 32
          %269 = vsyncadd %s263, %s268
          %s270 = sadd.s32 %s30, %s29
          %s271 = smul.addr %s270, 32
          %s272 = scalar_lea.hbm %s3, %s271
          %s274 = sshll.u32 %s266, 4
          %s275 = int_to_ptr.vmem [resolvable:$true] %s274
          %277 = dma.hbm_to_vmem [thread:$0]  %s272, 32, %s275, %s263
        $region32: #{tpu_custom_call.1} parent=15 // pred_fallthru
          _
      $region16: #{tpu_custom_call.1} parent=5 // pred_fallthru
        _
      %p278 = scmp.le.s32.totalorder 1, %s22
      %p279 = scmp.lt.s32.totalorder %s22, 3
      %p280 = pnand %p278, %p279
      %p281 = pneg %p280
      // Predicated region
      $region33: #{tpu_custom_call.1} parent=5 // pred_check
        _
      $region34: #{tpu_custom_call.1} parent=5 // pred_check_branch
        %283 = sbr.rel (%p280) target = $region36
      $region35: #{tpu_custom_call.1} parent=5 // pred_region
        %s284 = ssub.s32 %s22, 1
        %s285 = sand.u32 %s49, 1
        %s286 = scalar_lea.sflag [#allocation3], %s285
        %s287 = sand.u32 %s49, 1
        %s288 = smul.addr %s287, 6
        %s289 = scalar_lea.vmem [#allocation2], %s288
        // Predicated region
        $region37: #{tpu_custom_call.1} parent=35 // pred_check
          %p290 = pneg %p62
        $region38: #{tpu_custom_call.1} parent=35 // pred_check_branch
          %292 = sbr.rel (%p290) target = $region40
        $region39: #{tpu_custom_call.1} parent=35 // pred_region
          %293 = dma.done %s286, 96
        $region40: #{tpu_custom_call.1} parent=35 // pred_fallthru
          _
        %s294 = sand.u32 %s27, 1
        %s295 = scalar_lea.sflag [#allocation6], %s294
        %s296 = sand.u32 %s77, 1
        %s297 = smul.addr %s296, 6
        %s298 = scalar_lea.vmem [#allocation5], %s297
        // Predicated region
        $region41: #{tpu_custom_call.1} parent=35 // pred_check
          %p299 = pneg %p90
        $region42: #{tpu_custom_call.1} parent=35 // pred_check_branch
          %301 = sbr.rel (%p299) target = $region44
        $region43: #{tpu_custom_call.1} parent=35 // pred_region
          %302 = dma.done %s295, 96
        $region44: #{tpu_custom_call.1} parent=35 // pred_fallthru
          _
        %s303 = sand.u32 %s27, 1
        %s304 = scalar_lea.sflag [#allocation6], %s303
        %s305 = sand.u32 %s105, 1
        %s306 = smul.addr %s305, 6
        %s307 = scalar_lea.vmem [#allocation7], %s306
        // Predicated region
        $region45: #{tpu_custom_call.1} parent=35 // pred_check
          %p308 = pneg %p118
        $region46: #{tpu_custom_call.1} parent=35 // pred_check_branch
          %310 = sbr.rel (%p308) target = $region48
        $region47: #{tpu_custom_call.1} parent=35 // pred_region
          %311 = dma.done %s304, 96
        $region48: #{tpu_custom_call.1} parent=35 // pred_fallthru
          _
        %s312 = sand.u32 %s133, 1
        %s313 = scalar_lea.sflag [#allocation9], %s312
        %s314 = sand.u32 %s133, 1
        %s315 = smul.addr %s314, 2
        %s316 = scalar_lea.vmem [#allocation8], %s315
        // Predicated region
        $region49: #{tpu_custom_call.1} parent=35 // pred_check
          %p317 = pneg %p146
        $region50: #{tpu_custom_call.1} parent=35 // pred_check_branch
          %319 = sbr.rel (%p317) target = $region52
        $region51: #{tpu_custom_call.1} parent=35 // pred_region
          %320 = dma.done %s313, 32
        $region52: #{tpu_custom_call.1} parent=35 // pred_fallthru
          _
        %s321 = sand.u32 %s49, 1
        %s322 = scalar_lea.sflag [#allocation3], %s321
        %s323 = sand.u32 %s49, 1
        %s324 = smul.addr %s323, 6
        %s325 = scalar_lea.vmem [#allocation2], %s324
        %p326 = pneg %p62
        %p327 = pneg %p59
        %s328 = sand.u32 %s27, 1
        %s329 = scalar_lea.sflag [#allocation6], %s328
        %s330 = sand.u32 %s77, 1
        %s331 = smul.addr %s330, 6
        %s332 = scalar_lea.vmem [#allocation5], %s331
        %p333 = pneg %p90
        %p334 = pneg %p87
        %s335 = sand.u32 %s27, 1
        %s336 = scalar_lea.sflag [#allocation6], %s335
        %s337 = sand.u32 %s105, 1
        %s338 = smul.addr %s337, 6
        %s339 = scalar_lea.vmem [#allocation7], %s338
        %p340 = pneg %p118
        %p341 = pneg %p115
        %s342 = sand.u32 %s133, 1
        %s343 = scalar_lea.sflag [#allocation9], %s342
        %s344 = sand.u32 %s133, 1
        %s345 = smul.addr %s344, 2
        %s346 = scalar_lea.vmem [#allocation8], %s345
        %p347 = pneg %p146
        %p348 = pneg %p143
        %p349 = pneg %p174
        %p350 = pneg %p171
        %s351 = sand.u32 %s161, 1
        %s352 = scalar_lea.sflag [#allocation4], %s351
        %s353 = sand.u32 %s161, 1
        %s354 = smul.addr %s353, 6
        %s355 = scalar_lea.vmem [#allocation10], %s354
        %v356 = vld [vmem:[%s289] sm:$0x3]
        %s357 = scalar_lea.vmem %s289, 2 [#allocation2]
        %v358 = vld [vmem:[%s357] sm:$0x3]
        %s359 = scalar_lea.vmem %s289, 4 [#allocation2]
        %v360 = vld [vmem:[%s359] sm:$0x3]
        %v361 = vld [vmem:[%s316] sm:$0x3]
        %v362 = vlaneseq
        %v363 = vshrl.u32 %v362, 7
        %v364 = vlaneseq
        %v365 = vand.u32 %v364, 127
        %s366 = smul.u32 %s32, 256
        %v367 = vmul.u32 %v363, 128
        %v368 = vstv %s366
        %v369 = vadd.s32 %v368, %v367
        %v370 = vadd.s32 %v369, %v365
        %v371 = vcvt.s32.f32 %v370
        %v372 = vmul.f32 %v371, 0.0625
        %v373 = vfloor.f32 %v372
        %v374 = vadd.f32 %v373, 1.0
        %v375 = vmul.f32 %v374, 16.0
        %vm376 = vcmp.le.f32.partialorder %v375, %v371
        %v377 = vsel %vm376, %v374, %v373
        %v378 = vmul.f32 %v377, 16.0
        %vm379 = vcmp.gt.f32.partialorder %v378, %v371
        %v380 = vsub.f32 %v377, 1.0
        %v381 = vsel %vm379, %v380, %v377
        %v382 = vmul.f32 %v381, 16.0
        %v383 = vsub.f32 %v371, %v382
        %v384 = vmul.f32 %v383, 0.13333334
        %v385 = vadd.f32 %v384, -1.0
        %v386 = vmul.f32 %v381, 0.13333334
        %v387 = vadd.f32 %v386, -1.0
        %v388 = vsub.f32 0.0, %v387
        %v389 = vmul.f32 %v385, %v385
        %v390 = vmul.f32 %v388, %v388
        %v391 = vadd.f32 %v389, %v390
        %v392 = vadd.f32 %v391, 3.0
        %v393 = vrsqrt.pop %v392
        %v394 = vsub.f32 0.0, %v385
        %v395 = vmul.f32 %v394, %v356
        %v396 = vsub.f32 0.0, %v388
        %v397 = vmul.f32 %v396, %v358
        %v398 = vadd.f32 %v395, %v397
        %v399 = vmul.f32 %v360, 1.7320508
        %v400 = vadd.f32 %v398, %v399
        %v401 = vmul.f32 %v400, %v393
        %v402 = vmax.f32 %v401, 0.0
        %v403 = vmin.f32 %v402, 1.0
        %v404 = vmul.f32 %v403, %v403
        %v405 = vmul.f32 %v361, %v361
        %v406 = vmul.f32 %v405, %v405
        %v407 = vsub.f32 1.0, %v404
        %v408 = vmul.f32 %v406, %v407
        %v409 = vadd.f32 %v404, 1e-06
        %v410 = vrcp.pop %v409
        %v411 = vmul.f32 %v408, %v410
        %v412 = vadd.f32 %v411, 1.0
        %v413 = vrsqrt.pop %v412
        %v414 = vmul.f32 %v412, %v413
        %vm415 = vcmp.eq.f32.partialorder %v412, inf
        %v416 = vsel %vm415, %v412, %v414
        %vm417 = vcmp.eq.f32.partialorder %v412, 0.0
        %v418 = vand.u32 %v412, 2147483648
        %v419 = vsel %vm417, %v418, %v416
        %v420 = vadd.f32 %v419, 1.0
        %v421 = vrcp.pop %v420
        %v422 = vmul.f32 %v421, 4.0
        %v423 = vmul.f32 %v422, %v421
        %v424 = vsub.f32 %v406, 1.0
        %v425 = vmul.f32 %v404, %v424
        %v426 = vadd.f32 %v425, 1.0
        %v427 = vmul.f32 %v426, 3.1415927
        %v428 = vmul.f32 %v427, %v426
        %v429 = vadd.f32 %v428, 1e-06
        %v430 = vmul.f32 %v403, 4.0
        %v431 = vadd.f32 %v430, 1e-06
        %v432 = vmul.f32 %v429, %v431
        %v433 = vmul.f32 %v406, 3.1415927
        %v434 = vmul.f32 %v433, %v423
        %v435 = vrcp.pop %v432
        %v436 = vmul.f32 %v434, %v435
        %v437 = vadd.f32 %v392, 0.0001
        %v438 = vrcp.pop %v437
        %v439 = vmul.f32 %v393, 1.7320508
        %v440 = vmax.f32 %v439, 0.0
        %v441 = vmin.f32 %v440, 1.0
        %v442 = vmul.f32 %v441, %v441
        %v443 = vmul.f32 %v442, %v442
        %v444 = vmul.f32 %v443, %v443
        %v445 = vmul.f32 %v444, %v442
        %v446 = vmul.f32 %v438, %v445
        %v447 = vmul.f32 %v446, 5.76
        %v448 = vmul.f32 %v403, %v447
        %v449 = vmul.f32 %v436, %v447
        %v450 = vld [vmem:[%s298] sm:$0x3]
        %v451 = vmul.f32 %v450, %v448
        %v452 = vld [vmem:[%s307] sm:$0x3]
        %v453 = vmul.f32 %v452, %v449
        %v454 = vadd.f32 %v451, %v453
        %v455 = vpow.f32 %v454, 0.45454547
        %v456 = vmax.f32 %v455, 0.0
        %v457 = vmin.f32 %v456, 1.0
        %458 = vst [vmem:[%s355] sm:$0x3] %v457
        %s459 = scalar_lea.vmem %s298, 2 [#allocation5]
        %v460 = vld [vmem:[%s459] sm:$0x3]
        %v461 = vmul.f32 %v460, %v448
        %s462 = scalar_lea.vmem %s307, 2 [#allocation7]
        %v463 = vld [vmem:[%s462] sm:$0x3]
        %v464 = vmul.f32 %v463, %v449
        %v465 = vadd.f32 %v461, %v464
        %v466 = vpow.f32 %v465, 0.45454547
        %v467 = vmax.f32 %v466, 0.0
        %v468 = vmin.f32 %v467, 1.0
        %s469 = scalar_lea.vmem %s355, 2 [#allocation10]
        %470 = vst [vmem:[%s469] sm:$0x3] %v468
        %s471 = scalar_lea.vmem %s298, 4 [#allocation5]
        %v472 = vld [vmem:[%s471] sm:$0x3]
        %v473 = vmul.f32 %v472, %v448
        %s474 = scalar_lea.vmem %s307, 4 [#allocation7]
        %v475 = vld [vmem:[%s474] sm:$0x3]
        %v476 = vmul.f32 %v475, %v449
        %v477 = vadd.f32 %v473, %v476
        %v478 = vpow.f32 %v477, 0.45454547
        %v479 = vmax.f32 %v478, 0.0
        %v480 = vmin.f32 %v479, 1.0
        %s481 = scalar_lea.vmem %s355, 4 [#allocation10]
        %482 = vst [vmem:[%s481] sm:$0x3] %v480
        %s483 = sand.u32 %s161, 1
        %s484 = scalar_lea.sflag [#allocation4], %s483
        %s485 = sand.u32 %s161, 1
        %s486 = smul.addr %s485, 6
        %s487 = scalar_lea.vmem [#allocation10], %s486
        // Predicated region
        $region53: #{tpu_custom_call.1} parent=35 // pred_check
          %p488 = pneg %p171
        $region54: #{tpu_custom_call.1} parent=35 // pred_check_branch
          %490 = sbr.rel (%p488) target = $region56
        $region55: #{tpu_custom_call.1} parent=35 // pred_region
          %s492 = ssub.s32 96, 96
          %493 = vsyncadd %s484, %s492
          %s494 = smul.addr %s31, 3
          %s495 = sadd.s32 %s32, %s494
          %s496 = smul.addr %s495, 32
          %s497 = scalar_lea.hbm %s4, %s496
          %s498 = sshll.u32 %s487, 4
          %s499 = int_to_ptr.vmem [resolvable:$true] %s498
          %504 = dma.vmem_to_hbm [thread:$0]  %s499, 96, %s497, %s484, 32, 32, 2
        $region56: #{tpu_custom_call.1} parent=35 // pred_fallthru
          _
      $region36: #{tpu_custom_call.1} parent=5 // pred_fallthru
        _
      %p505 = scmp.le.s32.totalorder 2, %s22
      // Predicated region
      $region57: #{tpu_custom_call.1} parent=5 // pred_check
        %p506 = pneg %p505
      $region58: #{tpu_custom_call.1} parent=5 // pred_check_branch
        %508 = sbr.rel (%p506) target = $region60
      $region59: #{tpu_custom_call.1} parent=5 // pred_region
        %s509 = ssub.s32 %s22, 2
        // Predicated region
        $region61: #{tpu_custom_call.1} parent=59 // pred_check
          %p510 = pneg %p177
        $region62: #{tpu_custom_call.1} parent=59 // pred_check_branch
          %512 = sbr.rel (%p510) target = $region64
        $region63: #{tpu_custom_call.1} parent=59 // pred_region
          %s513 = sand.u32 %s162, 1
          %s514 = scalar_lea.sflag [#allocation4], %s513
          %s515 = sand.u32 %s162, 1
          %s516 = smul.addr %s515, 6
          %s517 = scalar_lea.vmem [#allocation10], %s516
          %518 = dma.done %s514, 96
        $region64: #{tpu_custom_call.1} parent=59 // pred_fallthru
          _
      $region60: #{tpu_custom_call.1} parent=5 // pred_fallthru
        _
    $region6: #{tpu_custom_call.1} parent=1 // loop_footer
      %s26 = sadd.s32 1, %s22
    $region7: #{tpu_custom_call.1} parent=1 // loop_footer_branch
      %21 = sbr.rel target = $region3
    $region8: #{tpu_custom_call.1} parent=1 // loop_exit
      _
    %519 = vsyncpa [#allocation3], 1
    %s520 = scalar_lea.sflag [#allocation3], 1
    %521 = vsyncpa %s520, 1
    %522 = vsyncpa [#allocation6], 1
    %s523 = scalar_lea.sflag [#allocation6], 1
    %524 = vsyncpa %s523, 1
    %525 = vsyncpa [#allocation9], 1
    %s526 = scalar_lea.sflag [#allocation9], 1
    %527 = vsyncpa %s526, 1
    %528 = vsyncpa [#allocation4], 1
    %s529 = scalar_lea.sflag [#allocation4], 1
    %530 = vsyncpa %s529, 1

</llo_original>
